<compile_context>
chip_gen: v7x
topology: tpu7x:2x2x1
jax: 0.10.0
libtpu: 0.0.40
codegen_flags: <defaults>
</compile_context>

<pallas_src>
import jax
import jax.numpy as jnp
from jax.experimental import pallas as pl
from jax.experimental.pallas import tpu as pltpu


HIDDEN = 256
OUT_PAD = 128            # lane-dense output width (column 0 holds q)
DEFAULT_TILE_B = 2048    # safe under v5e's 16 MiB default scoped VMEM


def _qnet_kernel(x_ref, a_ref, w1x_ref, w1a_ref, b1_ref, w2_ref, b2_ref,
                 w3_ref, b3_ref, out_ref):
    # fc1: two bf16 MXU matmuls over the split [x | a] columns, f32 accumulate.
    x16 = x_ref[...].astype(jnp.bfloat16)
    a16 = a_ref[...].astype(jnp.bfloat16)
    h1 = (jnp.dot(x16, w1x_ref[...], preferred_element_type=jnp.float32)
          + jnp.dot(a16, w1a_ref[...], preferred_element_type=jnp.float32)
          + b1_ref[...])
    h1 = jnp.maximum(h1, 0.0)

    # fc2: bf16 MXU matmul, f32 accumulation.
    h2 = jnp.dot(h1.astype(jnp.bfloat16), w2_ref[...],
                 preferred_element_type=jnp.float32) + b2_ref[...]
    h2 = jnp.maximum(h2, 0.0)

    # fc3 (out_features == 1): W3 zero-padded to (256, 128) so the result tile
    # is lane-dense (tb, 128) -> unmasked vector stores.  Only column 0 is
    # meaningful; b3 is an SMEM scalar added to every column (harmless).
    q = jnp.dot(h2.astype(jnp.bfloat16), w3_ref[...],
                preferred_element_type=jnp.float32) + b3_ref[0, 0]
    out_ref[...] = q


def _choose_tile_b(B, tile_b):
    """Pick the batch tile: big tiles to amortize per-step cost, but >=2 grid
    steps (when the batch is large enough) so v7x's 2 TCs both get work."""
    tile_b = max(8, (tile_b // 8) * 8)
    if B > tile_b:
        return tile_b
    half = B // 2
    if half >= 256 and half % 8 == 0:
        return half          # 2 grid steps, evenly split
    return B                 # single full-array tile (tiny batches)


def qnetwork_forward(x, a, params, tile_b=DEFAULT_TILE_B):
    """x: (B, obs_dim) f32, a: (B, act_dim) f32 -> (B, 1) f32."""
    w1x, w1a, b1, w2, b2, w3p, b3 = params
    B, obs_dim = x.shape
    act_dim = a.shape[1]

    tb = _choose_tile_b(B, tile_b)
    n_tiles = pl.cdiv(B, tb)   # trailing partial block overhangs; OOB rows masked

    out = pl.pallas_call(
        _qnet_kernel,
        out_shape=jax.ShapeDtypeStruct((B, OUT_PAD), jnp.float32),
        grid=(n_tiles,),
        in_specs=[
            pl.BlockSpec((tb, obs_dim), lambda i: (i, 0)),        # x (tiled)
            pl.BlockSpec((tb, act_dim), lambda i: (i, 0)),        # a (tiled)
            pl.BlockSpec((obs_dim, HIDDEN), lambda i: (0, 0)),    # W1[:obs]  (resident)
            pl.BlockSpec((act_dim, HIDDEN), lambda i: (0, 0)),    # W1[obs:]  (resident)
            pl.BlockSpec((1, HIDDEN), lambda i: (0, 0)),          # b1        (resident)
            pl.BlockSpec((HIDDEN, HIDDEN), lambda i: (0, 0)),     # W2        (resident)
            pl.BlockSpec((1, HIDDEN), lambda i: (0, 0)),          # b2        (resident)
            pl.BlockSpec((HIDDEN, OUT_PAD), lambda i: (0, 0)),    # W3 padded (resident)
            pl.BlockSpec(memory_space=pltpu.MemorySpace.SMEM),    # b3 scalar
        ],
        out_specs=pl.BlockSpec((tb, OUT_PAD), lambda i: (i, 0)),
        compiler_params=pltpu.CompilerParams(
            dimension_semantics=("parallel",)),
    )(x, a, w1x, w1a, b1, w2, b2, w3p, b3)

    return out[:, :1]


def init_params(key, obs_dim, act_dim):
    """PyTorch-Linear-style init (uniform +-1/sqrt(fan_in)).

    Weights are stored pre-transposed as (in_features, out_features); matmul
    weights are bf16 (MXU-native), biases stay f32.  W1 is split into the
    obs / act column blocks; W3 is zero-padded to (256, 128) for the
    lane-dense output path (column 0 is the real weight column).
    """
    k1, k2, k3, k4, k5, k6 = jax.random.split(key, 6)
    in1 = obs_dim + act_dim
    bnd1 = 1.0 / jnp.sqrt(jnp.float32(in1))
    bnd2 = 1.0 / jnp.sqrt(jnp.float32(HIDDEN))

    w1 = jax.random.uniform(k1, (in1, HIDDEN), jnp.float32, -bnd1, bnd1)
    b1 = jax.random.uniform(k2, (1, HIDDEN), jnp.float32, -bnd1, bnd1)
    w2 = jax.random.uniform(k3, (HIDDEN, HIDDEN), jnp.float32, -bnd2, bnd2)
    b2 = jax.random.uniform(k4, (1, HIDDEN), jnp.float32, -bnd2, bnd2)
    w3 = jax.random.uniform(k5, (HIDDEN, 1), jnp.float32, -bnd2, bnd2)
    b3 = jax.random.uniform(k6, (1, 1), jnp.float32, -bnd2, bnd2)

    w1x = w1[:obs_dim].astype(jnp.bfloat16)
    w1a = w1[obs_dim:].astype(jnp.bfloat16)
    w3p = jnp.zeros((HIDDEN, OUT_PAD), jnp.float32).at[:, 0].set(w3[:, 0])
    return (w1x, w1a, b1,
            w2.astype(jnp.bfloat16), b2,
            w3p.astype(jnp.bfloat16),
            b3)


def qnetwork_reference(x, a, params):
    """Pure-JAX reference mirroring the kernel's bf16-matmul / f32-acc math."""
    w1x, w1a, b1, w2, b2, w3p, b3 = params
    h1 = jnp.maximum(
        jnp.dot(x.astype(jnp.bfloat16), w1x, preferred_element_type=jnp.float32)
        + jnp.dot(a.astype(jnp.bfloat16), w1a, preferred_element_type=jnp.float32)
        + b1, 0.0)
    h2 = jnp.maximum(
        jnp.dot(h1.astype(jnp.bfloat16), w2,
                preferred_element_type=jnp.float32) + b2, 0.0)
    q = jnp.dot(h2.astype(jnp.bfloat16), w3p,
                preferred_element_type=jnp.float32) + b3[0, 0]
    return q[:, :1]


if __name__ == "__main__":
    key = jax.random.PRNGKey(0)
    k_param, k_x, k_a = jax.random.split(key, 3)

    batch, obs_dim, act_dim = 8, 16, 4
    x = jax.random.normal(k_x, (batch, obs_dim), jnp.float32)
    a = jax.random.normal(k_a, (batch, act_dim), jnp.float32)
    params = init_params(k_param, obs_dim, act_dim)

    # Small single-tile batch.
    q = jax.block_until_ready(qnetwork_forward(x, a, params))
    q_ref = qnetwork_reference(x, a, params)
    assert q.shape == (batch, 1)
    assert jnp.allclose(q, q_ref, atol=1e-2, rtol=1e-2)

    # Multi-tile + ragged tail path (overhanging trailing block, masked writes).
    b2_ = 600
    kx2, ka2 = jax.random.split(jax.random.PRNGKey(1))
    x2 = jax.random.normal(kx2, (b2_, obs_dim), jnp.float32)
    a2 = jax.random.normal(ka2, (b2_, act_dim), jnp.float32)
    q2 = jax.block_until_ready(qnetwork_forward(x2, a2, params, tile_b=256))
    q2_ref = qnetwork_reference(x2, a2, params)
    assert q2.shape == (b2_, 1)
    assert jnp.allclose(q2, q2_ref, atol=1e-2, rtol=1e-2)

    print("KERNEL_OK")
</pallas_src>

<mosaic_0001>
module attributes {stable_mosaic.version = 11 : i64} {
  func.func @_qnet_kernel(%arg0: i32, %arg1: memref<8x16xf32, #tpu.memory_space<vmem>>, %arg2: memref<8x4xf32, #tpu.memory_space<vmem>>, %arg3: memref<16x256xbf16, #tpu.memory_space<vmem>>, %arg4: memref<4x256xbf16, #tpu.memory_space<vmem>>, %arg5: memref<1x256xf32, #tpu.memory_space<vmem>>, %arg6: memref<256x256xbf16, #tpu.memory_space<vmem>>, %arg7: memref<1x256xf32, #tpu.memory_space<vmem>>, %arg8: memref<256x128xbf16, #tpu.memory_space<vmem>>, %arg9: memref<1x1xf32, #tpu.memory_space<smem>>, %arg10: memref<8x128xf32, #tpu.memory_space<vmem>>) attributes {dimension_semantics = [#tpu.dimension_semantics<parallel>], iteration_bounds = array<i64: 1>, scalar_prefetch = 0 : i64, scratch_operands = 0 : i64, tpu.core_type = #tpu.core_type<tc>, window_params = [{transform_indices = @transform_0, window_bounds = array<i64: 8, 16>}, {transform_indices = @transform_1, window_bounds = array<i64: 8, 4>}, {pipeline_mode = #tpu.pipeline_mode<synchronous>, transform_indices = @transform_2, window_bounds = array<i64: 16, 256>}, {pipeline_mode = #tpu.pipeline_mode<synchronous>, transform_indices = @transform_3, window_bounds = array<i64: 4, 256>}, {pipeline_mode = #tpu.pipeline_mode<synchronous>, transform_indices = @transform_4, window_bounds = array<i64: 1, 256>}, {pipeline_mode = #tpu.pipeline_mode<synchronous>, transform_indices = @transform_5, window_bounds = array<i64: 256, 256>}, {pipeline_mode = #tpu.pipeline_mode<synchronous>, transform_indices = @transform_6, window_bounds = array<i64: 1, 256>}, {pipeline_mode = #tpu.pipeline_mode<synchronous>, transform_indices = @transform_7, window_bounds = array<i64: 256, 128>}, {transform_indices = @transform_8, window_bounds = array<i64: 1, 1>}, {transform_indices = @transform_9, window_bounds = array<i64: 8, 128>}]} {
    %c0 = arith.constant 0 : index
    %c0_0 = arith.constant 0 : index
    %0 = vector.load %arg1[%c0, %c0_0] : memref<8x16xf32, #tpu.memory_space<vmem>>, vector<8x16xf32>
    %1 = arith.truncf %0 : vector<8x16xf32> to vector<8x16xbf16>
    %c0_1 = arith.constant 0 : index
    %c0_2 = arith.constant 0 : index
    %2 = vector.load %arg2[%c0_1, %c0_2] : memref<8x4xf32, #tpu.memory_space<vmem>>, vector<8x4xf32>
    %3 = arith.truncf %2 : vector<8x4xf32> to vector<8x4xbf16>
    %c0_3 = arith.constant 0 : index
    %c0_4 = arith.constant 0 : index
    %4 = vector.load %arg3[%c0_3, %c0_4] : memref<16x256xbf16, #tpu.memory_space<vmem>>, vector<16x256xbf16>
    %cst = arith.constant dense<0.000000e+00> : vector<8x256xf32>
    %5 = tpu.matmul %1, %4, %cst {dimension_numbers = #tpu.dot_dimension_numbers<[1], [0], [0], [1], [0, 0, 1, 1], [], []>} : vector<8x16xbf16>, vector<16x256xbf16>, vector<8x256xf32> -> vector<8x256xf32>
    %c0_5 = arith.constant 0 : index
    %c0_6 = arith.constant 0 : index
    %6 = vector.load %arg4[%c0_5, %c0_6] : memref<4x256xbf16, #tpu.memory_space<vmem>>, vector<4x256xbf16>
    %cst_7 = arith.constant dense<0.000000e+00> : vector<8x256xf32>
    %7 = tpu.matmul %3, %6, %cst_7 {dimension_numbers = #tpu.dot_dimension_numbers<[1], [0], [0], [1], [0, 0, 1, 1], [], []>} : vector<8x4xbf16>, vector<4x256xbf16>, vector<8x256xf32> -> vector<8x256xf32>
    %8 = arith.addf %5, %7 : vector<8x256xf32>
    %c0_8 = arith.constant 0 : index
    %c0_9 = arith.constant 0 : index
    %9 = vector.load %arg5[%c0_8, %c0_9] : memref<1x256xf32, #tpu.memory_space<vmem>>, vector<1x256xf32>
    %10 = vector.broadcast %9 : vector<1x256xf32> to vector<8x256xf32>
    %11 = arith.addf %8, %10 : vector<8x256xf32>
    %cst_10 = arith.constant 0.000000e+00 : f32
    %12 = vector.broadcast %cst_10 : f32 to vector<8x256xf32>
    %13 = arith.maximumf %11, %12 : vector<8x256xf32>
    %14 = arith.truncf %13 : vector<8x256xf32> to vector<8x256xbf16>
    %c0_11 = arith.constant 0 : index
    %c0_12 = arith.constant 0 : index
    %15 = vector.load %arg6[%c0_11, %c0_12] : memref<256x256xbf16, #tpu.memory_space<vmem>>, vector<256x256xbf16>
    %cst_13 = arith.constant dense<0.000000e+00> : vector<8x256xf32>
    %16 = tpu.matmul %14, %15, %cst_13 {dimension_numbers = #tpu.dot_dimension_numbers<[1], [0], [0], [1], [0, 0, 1, 1], [], []>} : vector<8x256xbf16>, vector<256x256xbf16>, vector<8x256xf32> -> vector<8x256xf32>
    %c0_14 = arith.constant 0 : index
    %c0_15 = arith.constant 0 : index
    %17 = vector.load %arg7[%c0_14, %c0_15] : memref<1x256xf32, #tpu.memory_space<vmem>>, vector<1x256xf32>
    %18 = vector.broadcast %17 : vector<1x256xf32> to vector<8x256xf32>
    %19 = arith.addf %16, %18 : vector<8x256xf32>
    %cst_16 = arith.constant 0.000000e+00 : f32
    %20 = vector.broadcast %cst_16 : f32 to vector<8x256xf32>
    %21 = arith.maximumf %19, %20 : vector<8x256xf32>
    %22 = arith.truncf %21 : vector<8x256xf32> to vector<8x256xbf16>
    %c0_17 = arith.constant 0 : index
    %c0_18 = arith.constant 0 : index
    %23 = vector.load %arg8[%c0_17, %c0_18] : memref<256x128xbf16, #tpu.memory_space<vmem>>, vector<256x128xbf16>
    %cst_19 = arith.constant dense<0.000000e+00> : vector<8x128xf32>
    %24 = tpu.matmul %22, %23, %cst_19 {dimension_numbers = #tpu.dot_dimension_numbers<[1], [0], [0], [1], [0, 0, 1, 1], [], []>} : vector<8x256xbf16>, vector<256x128xbf16>, vector<8x128xf32> -> vector<8x128xf32>
    %c0_20 = arith.constant 0 : index
    %c0_21 = arith.constant 0 : index
    %25 = memref.load %arg9[%c0_20, %c0_21] : memref<1x1xf32, #tpu.memory_space<smem>>
    %26 = vector.broadcast %25 : f32 to vector<8x128xf32>
    %27 = arith.addf %24, %26 : vector<8x128xf32>
    %c0_22 = arith.constant 0 : index
    %c0_23 = arith.constant 0 : index
    %28 = vector.load %arg10[%c0_22, %c0_23] : memref<8x128xf32, #tpu.memory_space<vmem>>, vector<8x128xf32>
    tpu.vector_store %arg10[%c0_22, %c0_23], %27 {strides = array<i32>} : memref<8x128xf32, #tpu.memory_space<vmem>>, vector<8x128xf32>,
    return
  }
  func.func @transform_0(%arg0: i32) -> (i32, i32) {
    %c0_i32 = arith.constant 0 : i32
    %c0_i32_0 = arith.constant 0 : i32
    return %arg0, %c0_i32 : i32, i32
  }
  func.func @transform_1(%arg0: i32) -> (i32, i32) {
    %c0_i32 = arith.constant 0 : i32
    %c0_i32_0 = arith.constant 0 : i32
    return %arg0, %c0_i32 : i32, i32
  }
  func.func @transform_2(%arg0: i32) -> (i32, i32) {
    %c0_i32 = arith.constant 0 : i32
    %c0_i32_0 = arith.constant 0 : i32
    %c0_i32_1 = arith.constant 0 : i32
    return %c0_i32, %c0_i32_0 : i32, i32
  }
  func.func @transform_3(%arg0: i32) -> (i32, i32) {
    %c0_i32 = arith.constant 0 : i32
    %c0_i32_0 = arith.constant 0 : i32
    %c0_i32_1 = arith.constant 0 : i32
    return %c0_i32, %c0_i32_0 : i32, i32
  }
  func.func @transform_4(%arg0: i32) -> (i32, i32) {
    %c0_i32 = arith.constant 0 : i32
    %c0_i32_0 = arith.constant 0 : i32
    %c0_i32_1 = arith.constant 0 : i32
    return %c0_i32, %c0_i32_0 : i32, i32
  }
  func.func @transform_5(%arg0: i32) -> (i32, i32) {
    %c0_i32 = arith.constant 0 : i32
    %c0_i32_0 = arith.constant 0 : i32
    %c0_i32_1 = arith.constant 0 : i32
    return %c0_i32, %c0_i32_0 : i32, i32
  }
  func.func @transform_6(%arg0: i32) -> (i32, i32) {
    %c0_i32 = arith.constant 0 : i32
    %c0_i32_0 = arith.constant 0 : i32
    %c0_i32_1 = arith.constant 0 : i32
    return %c0_i32, %c0_i32_0 : i32, i32
  }
  func.func @transform_7(%arg0: i32) -> (i32, i32) {
    %c0_i32 = arith.constant 0 : i32
    %c0_i32_0 = arith.constant 0 : i32
    %c0_i32_1 = arith.constant 0 : i32
    return %c0_i32, %c0_i32_0 : i32, i32
  }
  func.func @transform_8(%arg0: i32) -> (i32, i32) {
    %c0_i32 = arith.constant 0 : i32
    %c0_i32_0 = arith.constant 0 : i32
    %c0_i32_1 = arith.constant 0 : i32
    return %c0_i32, %c0_i32_0 : i32, i32
  }
  func.func @transform_9(%arg0: i32) -> (i32, i32) {
    %c0_i32 = arith.constant 0 : i32
    %c0_i32_0 = arith.constant 0 : i32
    return %arg0, %c0_i32 : i32, i32
  }
}

</mosaic_0001>

<llo_original>
// kernel: tpu_custom_call.1
$region0: #{tpu_custom_call.1}
  #allocation0 [shape = 'u32[]', space=smem, size = 0x4, offset = 0x4, fixed_abs, tag = 'smem constant byte address 0x4 - core index']
  #allocation1 [shape = 'u32[144,128]{1,0:T(1,128)}', space=vmem, size = 0x12000, scoped, tag = 'internal scratch']
  #allocation2 [shape = 'f32[1,1]{1,0:T(1,128)S(6)}', space=smem, size = 0x200, scoped, tag = 'scoped memory for tpu_custom_call.1']
  %s0 = inlined_call_operand.hbm [shape: f32[8,16], index: 0, kind: input, shape index: {}]
  %s1 = inlined_call_operand.vmem [shape: f32[8,4], index: 1, kind: input, shape index: {}]
  %s2 = inlined_call_operand.vmem [shape: bf16[16,256], index: 2, kind: input, shape index: {}]
  %s3 = inlined_call_operand.vmem [shape: bf16[4,256], index: 3, kind: input, shape index: {}]
  %s4 = inlined_call_operand.vmem [shape: f32[1,256], index: 4, kind: input, shape index: {}]
  %s5 = inlined_call_operand.hbm [shape: bf16[256,256], index: 5, kind: input, shape index: {}]
  %s6 = inlined_call_operand.vmem [shape: f32[1,256], index: 6, kind: input, shape index: {}]
  %s7 = inlined_call_operand.hbm [shape: bf16[256,128], index: 7, kind: input, shape index: {}]
  %s8 = inlined_call_operand.<no memory space> [shape: f32[1,1], index: 8, kind: input, shape index: {}]
  %s9 = inlined_call_operand.hbm [shape: f32[8,128], index: 9, kind: output, shape index: {}]
  %s10 = sld [smem:[#allocation0]]
  $region58: #{tpu_custom_call.1} parent=0
    _
  %s12 = ssub.s32 1, %s10
  %s13 = scalar_select 0, %s12, %s10
  %14 = sst [smem:[#allocation2]] %s8
  $region1: #{tpu_custom_call.1} parent=0
    #allocation3 [shape = 'u8[4096]{0}', space=vmem, size = 0x1000, scoped, tag = 'input window, operand 0, single buffered']
    #allocation4 [shape = 's32[1]{0}', space=sflag, size = 0x4, scoped, tag = 'scoped memory for tpu_custom_call.1']
    #allocation5 [shape = 's32[1]{0}', space=sflag, size = 0x4, scoped, tag = 'scoped memory for tpu_custom_call.1']
    #allocation6 [shape = 'u8[131072]{0}', space=vmem, size = 0x20000, scoped, tag = 'input window, operand 5, single buffered']
    #allocation7 [shape = 's32[1]{0}', space=sflag, size = 0x4, scoped, tag = 'scoped memory for tpu_custom_call.1']
    #allocation8 [shape = 'u8[65536]{0}', space=vmem, size = 0x10000, scoped, tag = 'input window, operand 7, single buffered']
    #allocation9 [shape = 'u8[4096]{0}', space=vmem, size = 0x1000, scoped, tag = 'output window, operand 0, single buffered']
    %15 = vsyncpa [#allocation4], 0
    %16 = vsyncpa [#allocation7], 0
    %17 = vsyncpa [#allocation5], 0
    // Predicated region
    $region2: #{tpu_custom_call.1} parent=1 // pred_check
      _
    $region3: #{tpu_custom_call.1} parent=1 // pred_check_branch
      %19 = sbr.rel (0) target = $region5
    $region4: #{tpu_custom_call.1} parent=1 // pred_region
      %s21 = ssub.s32 128, 128
      %22 = vsyncadd [#allocation4], %s21
      %s24 = sshll.u32 [#allocation3], 4
      %s25 = int_to_ptr.vmem [resolvable:$true] %s24
      %27 = dma.hbm_to_vmem [thread:$0]  %s0, 128, %s25, [#allocation4]
    $region5: #{tpu_custom_call.1} parent=1 // pred_fallthru
      _
    // Predicated region
    $region6: #{tpu_custom_call.1} parent=1 // pred_check
      _
    $region7: #{tpu_custom_call.1} parent=1 // pred_check_branch
      %29 = sbr.rel (0) target = $region9
    $region8: #{tpu_custom_call.1} parent=1 // pred_region
      _
    $region9: #{tpu_custom_call.1} parent=1 // pred_fallthru
      _
    // Predicated region
    $region10: #{tpu_custom_call.1} parent=1 // pred_check
      _
    $region11: #{tpu_custom_call.1} parent=1 // pred_check_branch
      %31 = sbr.rel (0) target = $region13
    $region12: #{tpu_custom_call.1} parent=1 // pred_region
      _
    $region13: #{tpu_custom_call.1} parent=1 // pred_fallthru
      _
    // Predicated region
    $region14: #{tpu_custom_call.1} parent=1 // pred_check
      _
    $region15: #{tpu_custom_call.1} parent=1 // pred_check_branch
      %33 = sbr.rel (0) target = $region17
    $region16: #{tpu_custom_call.1} parent=1 // pred_region
      _
    $region17: #{tpu_custom_call.1} parent=1 // pred_fallthru
      _
    // Predicated region
    $region18: #{tpu_custom_call.1} parent=1 // pred_check
      _
    $region19: #{tpu_custom_call.1} parent=1 // pred_check_branch
      %35 = sbr.rel (0) target = $region21
    $region20: #{tpu_custom_call.1} parent=1 // pred_region
      _
    $region21: #{tpu_custom_call.1} parent=1 // pred_fallthru
      _
    // Predicated region
    $region22: #{tpu_custom_call.1} parent=1 // pred_check
      _
    $region23: #{tpu_custom_call.1} parent=1 // pred_check_branch
      %37 = sbr.rel (0) target = $region25
    $region24: #{tpu_custom_call.1} parent=1 // pred_region
      %s39 = ssub.s32 4096, 4096
      %40 = vsyncadd [#allocation7], %s39
      %s41 = sshll.u32 [#allocation6], 4
      %s42 = int_to_ptr.vmem [resolvable:$true] %s41
      %47 = dma.hbm_to_vmem [thread:$0]  %s5, 4096, %s42, [#allocation7], 128, 128, 8
    $region25: #{tpu_custom_call.1} parent=1 // pred_fallthru
      _
    // Predicated region
    $region26: #{tpu_custom_call.1} parent=1 // pred_check
      _
    $region27: #{tpu_custom_call.1} parent=1 // pred_check_branch
      %49 = sbr.rel (0) target = $region29
    $region28: #{tpu_custom_call.1} parent=1 // pred_region
      _
    $region29: #{tpu_custom_call.1} parent=1 // pred_fallthru
      _
    // Predicated region
    $region30: #{tpu_custom_call.1} parent=1 // pred_check
      _
    $region31: #{tpu_custom_call.1} parent=1 // pred_check_branch
      %51 = sbr.rel (0) target = $region33
    $region32: #{tpu_custom_call.1} parent=1 // pred_region
      %s53 = ssub.s32 2048, 2048
      %54 = vsyncadd [#allocation7], %s53
      %s55 = sshll.u32 [#allocation8], 4
      %s56 = int_to_ptr.vmem [resolvable:$true] %s55
      %61 = dma.hbm_to_vmem [thread:$0]  %s7, 2048, %s56, [#allocation7], 64, 64, 4
    $region33: #{tpu_custom_call.1} parent=1 // pred_fallthru
      _
    // Predicated region
    $region34: #{tpu_custom_call.1} parent=1 // pred_check
      _
    $region35: #{tpu_custom_call.1} parent=1 // pred_check_branch
      %63 = sbr.rel (0) target = $region37
    $region36: #{tpu_custom_call.1} parent=1 // pred_region
      _
    $region37: #{tpu_custom_call.1} parent=1 // pred_fallthru
      _
    // Predicated region
    $region38: #{tpu_custom_call.1} parent=1 // pred_check
      _
    $region39: #{tpu_custom_call.1} parent=1 // pred_check_branch
      %65 = sbr.rel (0) target = $region41
    $region40: #{tpu_custom_call.1} parent=1 // pred_region
      %66 = dma.done [#allocation4], 128
    $region41: #{tpu_custom_call.1} parent=1 // pred_fallthru
      _
    // Predicated region
    $region42: #{tpu_custom_call.1} parent=1 // pred_check
      _
    $region43: #{tpu_custom_call.1} parent=1 // pred_check_branch
      %68 = sbr.rel (0) target = $region45
    $region44: #{tpu_custom_call.1} parent=1 // pred_region
      %69 = dma.done [#allocation7], 4096
    $region45: #{tpu_custom_call.1} parent=1 // pred_fallthru
      _
    // Predicated region
    $region46: #{tpu_custom_call.1} parent=1 // pred_check
      _
    $region47: #{tpu_custom_call.1} parent=1 // pred_check_branch
      %71 = sbr.rel (0) target = $region49
    $region48: #{tpu_custom_call.1} parent=1 // pred_region
      %72 = dma.done [#allocation7], 2048
    $region49: #{tpu_custom_call.1} parent=1 // pred_fallthru
      _
    %v74 = vld [vmem:[#allocation3] sm:$0xff]
    %v75 = vpack.c.bf16 %v74, %v74
    %v76 = vld [vmem:[%s1] sm:$0xff]
    %v77 = vpack.c.bf16 %v76, %v76
    %v78 = vld [vmem:[%s2] sm:$0xff]
    %v79 = vld [vmem:[%s2 + $0x8] sm:$0xff]
    %v80 = vld [vmem:[%s3] sm:$0xf]
    %v83 = vunpack.c.l.s4 1983009808
    %v84 = vunpack.c.0.s8 %v83
    %v85 = vlaneseq
    %v86 = vshrl.u32 %v85, 7
    %v87 = vsub.s32 %v84, %v86
    %v88 = vrot.slane %v80, %v87
    %v89 = vcombine.high %v88, %v88
    %vm90 = vcmask 31744
    %v92 = vsel %vm90, %v77, 0
    %vm94 = vcmask 1041408
    %v96 = vsel %vm94, %v88, 0
    %v99 = vsel %vm94, %v89, 0
    %101 = vmatprep.subr.bf16.mxu0 %v99
    %102 = vmatpush1.bf16.msra.mxu0 %v96
    %103 = vmatprep.subr.bf16.mxu0 0
    %104 = vmatpush1.bf16.msra.mxu0 0
    %105 = vmatprep.subr.bf16.mxu0 0
    %106 = vmatpush1.bf16.msra.mxu0 0
    %107 = vmatprep.subr.bf16.mxu0 0
    %108 = vmatpush1.bf16.msra.mxu0 0
    %109 = vmatprep.subr.bf16.mxu0 0
    %110 = vmatpush1.bf16.msra.mxu0 0
    %111 = vmatprep.subr.bf16.mxu0 0
    %112 = vmatpush1.bf16.msra.mxu0 0
    %113 = vmatprep.subr.bf16.mxu0 0
    %114 = vmatpush1.bf16.msra.mxu0 0
    %115 = vmatprep.subr.bf16.mxu0 0
    %116 = vmatpush1.bf16.msra.mxu0 0
    %117 = vmatprep.subr.bf16.mxu0 0
    %118 = vmatpush1.bf16.msra.mxu0 0
    %119 = vmatprep.subr.bf16.mxu0 0
    %120 = vmatpush1.bf16.msra.mxu0 0
    %121 = vmatprep.subr.bf16.mxu0 0
    %122 = vmatpush1.bf16.msra.mxu0 0
    %123 = vmatprep.subr.bf16.mxu0 0
    %124 = vmatpush1.bf16.msra.mxu0 0
    %125 = vmatprep.subr.bf16.mxu0 0
    %126 = vmatpush1.bf16.msra.mxu0 0
    %127 = vmatprep.subr.bf16.mxu0 0
    %128 = vmatpush1.bf16.msra.mxu0 0
    %129 = vmatprep.subr.bf16.mxu0 0
    %130 = vmatpush1.bf16.msra.mxu0 0
    %131 = vmatprep.subr.bf16.mxu0 0
    %132 = vmatpush1.bf16.msra.mxu0 0
    %133 = vmatprep.mubr.bf16.mxu0 0
    %134 = vmatmul.mubr.bf16.gmra.mrb[0].mxu0 %v92
    %v135 = vpop.f32.mrb[0].mxu0
    %v136 = vadd.f32 0.0, %v135
    %v137 = vpop.f32.mrb[0].mxu0
    %v138 = vadd.f32 0.0, %v137
    %v139 = vpop.f32.mrb[0].mxu0
    %v140 = vpop.f32.mrb[0].mxu0
    %141 = vdwg.mxu0
    %v144 = vunpack.c.l.b16 %v78
    %v145 = vunpack.c.h.b16 %v78
    %v146 = vunpack.c.l.b16 %v79
    %v147 = vunpack.c.h.b16 %v79
    %v148 = vpack.c.b16 %v146, %v144
    %v149 = vpack.c.b16 %v147, %v145
    %vm152 = vcmask 130048
    %v154 = vsel %vm152, %v75, 0
    %156 = vmatprep.subr.bf16.mxu0 %v149
    %157 = vmatpush1.bf16.msra.mxu0 %v148
    %158 = vmatprep.subr.bf16.mxu0 0
    %159 = vmatpush1.bf16.msra.mxu0 0
    %160 = vmatprep.subr.bf16.mxu0 0
    %161 = vmatpush1.bf16.msra.mxu0 0
    %162 = vmatprep.subr.bf16.mxu0 0
    %163 = vmatpush1.bf16.msra.mxu0 0
    %164 = vmatprep.subr.bf16.mxu0 0
    %165 = vmatpush1.bf16.msra.mxu0 0
    %166 = vmatprep.subr.bf16.mxu0 0
    %167 = vmatpush1.bf16.msra.mxu0 0
    %168 = vmatprep.subr.bf16.mxu0 0
    %169 = vmatpush1.bf16.msra.mxu0 0
    %170 = vmatprep.subr.bf16.mxu0 0
    %171 = vmatpush1.bf16.msra.mxu0 0
    %172 = vmatprep.subr.bf16.mxu0 0
    %173 = vmatpush1.bf16.msra.mxu0 0
    %174 = vmatprep.subr.bf16.mxu0 0
    %175 = vmatpush1.bf16.msra.mxu0 0
    %176 = vmatprep.subr.bf16.mxu0 0
    %177 = vmatpush1.bf16.msra.mxu0 0
    %178 = vmatprep.subr.bf16.mxu0 0
    %179 = vmatpush1.bf16.msra.mxu0 0
    %180 = vmatprep.subr.bf16.mxu0 0
    %181 = vmatpush1.bf16.msra.mxu0 0
    %182 = vmatprep.subr.bf16.mxu0 0
    %183 = vmatpush1.bf16.msra.mxu0 0
    %184 = vmatprep.subr.bf16.mxu0 0
    %185 = vmatpush1.bf16.msra.mxu0 0
    %186 = vmatprep.subr.bf16.mxu0 0
    %187 = vmatpush1.bf16.msra.mxu0 0
    %188 = vmatprep.mubr.bf16.mxu0 0
    %189 = vmatmul.mubr.bf16.gmra.mrb[0].mxu0 %v154
    %v190 = vpop.f32.mrb[0].mxu0
    %v191 = vadd.f32 %v136, %v190
    %v192 = vpop.f32.mrb[0].mxu0
    %v193 = vadd.f32 %v138, %v192
    %v194 = vpop.f32.mrb[0].mxu0
    %v195 = vpop.f32.mrb[0].mxu0
    %196 = vdwg.mxu0
    %v197 = vld [vmem:[%s4] sm:$0x3]
    %v199 = vlaneseq
    %v200 = vshrl.u32 %v199, 7
    %v201 = vsub.s32 0, %v200
    %v202 = vrot.slane %v197, %v201
    %v203 = vlaneseq
    %v204 = vshrl.u32 %v203, 7
    %v205 = vsub.s32 1, %v204
    %v206 = vrot.slane %v197, %v205
    %v209 = vadd.f32 %v191, %v202
    %v210 = vadd.f32 %v193, %v206
    %v211 = vmax.f32 %v209, 0.0
    %v212 = vmax.f32 %v210, 0.0
    %v213 = vpack.c.bf16 %v211, %v211
    %v214 = vpack.c.bf16 %v212, %v212
    %v215 = vld [vmem:[#allocation6] sm:$0xff]
    %v216 = vld [vmem:[#allocation6 + $0x8] sm:$0xff]
    %v217 = vld [vmem:[#allocation6 + $0x10] sm:$0xff]
    %v218 = vld [vmem:[#allocation6 + $0x18] sm:$0xff]
    %v219 = vld [vmem:[#allocation6 + $0x20] sm:$0xff]
    %v220 = vld [vmem:[#allocation6 + $0x28] sm:$0xff]
    %v221 = vld [vmem:[#allocation6 + $0x30] sm:$0xff]
    %v222 = vld [vmem:[#allocation6 + $0x38] sm:$0xff]
    %v223 = vld [vmem:[#allocation6 + $0x40] sm:$0xff]
    %v224 = vld [vmem:[#allocation6 + $0x48] sm:$0xff]
    %v225 = vld [vmem:[#allocation6 + $0x50] sm:$0xff]
    %v226 = vld [vmem:[#allocation6 + $0x58] sm:$0xff]
    %v227 = vld [vmem:[#allocation6 + $0x60] sm:$0xff]
    %v228 = vld [vmem:[#allocation6 + $0x68] sm:$0xff]
    %v229 = vld [vmem:[#allocation6 + $0x70] sm:$0xff]
    %v230 = vld [vmem:[#allocation6 + $0x78] sm:$0xff]
    %v231 = vld [vmem:[#allocation6 + $0x80] sm:$0xff]
    %v232 = vld [vmem:[#allocation6 + $0x88] sm:$0xff]
    %v233 = vld [vmem:[#allocation6 + $0x90] sm:$0xff]
    %v234 = vld [vmem:[#allocation6 + $0x98] sm:$0xff]
    %v235 = vld [vmem:[#allocation6 + $0xa0] sm:$0xff]
    %v236 = vld [vmem:[#allocation6 + $0xa8] sm:$0xff]
    %v237 = vld [vmem:[#allocation6 + $0xb0] sm:$0xff]
    %v238 = vld [vmem:[#allocation6 + $0xb8] sm:$0xff]
    %v239 = vld [vmem:[#allocation6 + $0xc0] sm:$0xff]
    %v240 = vld [vmem:[#allocation6 + $0xc8] sm:$0xff]
    %v241 = vld [vmem:[#allocation6 + $0xd0] sm:$0xff]
    %v242 = vld [vmem:[#allocation6 + $0xd8] sm:$0xff]
    %v243 = vld [vmem:[#allocation6 + $0xe0] sm:$0xff]
    %v244 = vld [vmem:[#allocation6 + $0xe8] sm:$0xff]
    %v245 = vld [vmem:[#allocation6 + $0xf0] sm:$0xff]
    %v246 = vld [vmem:[#allocation6 + $0xf8] sm:$0xff]
    %v247 = vld [vmem:[%s6] sm:$0x3]
    %v249 = vlaneseq
    %v250 = vshrl.u32 %v249, 7
    %v251 = vsub.s32 0, %v250
    %v252 = vrot.slane %v247, %v251
    %v253 = vlaneseq
    %v254 = vshrl.u32 %v253, 7
    %v255 = vsub.s32 1, %v254
    %v256 = vrot.slane %v247, %v255
    %v291 = vunpack.c.l.b16 %v215
    %v292 = vunpack.c.h.b16 %v215
    %v293 = vunpack.c.l.b16 %v216
    %v294 = vunpack.c.h.b16 %v216
    %v295 = vunpack.c.l.b16 %v217
    %v296 = vunpack.c.h.b16 %v217
    %v297 = vunpack.c.l.b16 %v218
    %v298 = vunpack.c.h.b16 %v218
    %v299 = vunpack.c.l.b16 %v219
    %v300 = vunpack.c.h.b16 %v219
    %v301 = vunpack.c.l.b16 %v220
    %v302 = vunpack.c.h.b16 %v220
    %v303 = vunpack.c.l.b16 %v221
    %v304 = vunpack.c.h.b16 %v221
    %v305 = vunpack.c.l.b16 %v222
    %v306 = vunpack.c.h.b16 %v222
    %v307 = vunpack.c.l.b16 %v223
    %v308 = vunpack.c.h.b16 %v223
    %v309 = vunpack.c.l.b16 %v224
    %v310 = vunpack.c.h.b16 %v224
    %v311 = vunpack.c.l.b16 %v225
    %v312 = vunpack.c.h.b16 %v225
    %v313 = vunpack.c.l.b16 %v226
    %v314 = vunpack.c.h.b16 %v226
    %v315 = vunpack.c.l.b16 %v227
    %v316 = vunpack.c.h.b16 %v227
    %v317 = vunpack.c.l.b16 %v228
    %v318 = vunpack.c.h.b16 %v228
    %v319 = vunpack.c.l.b16 %v229
    %v320 = vunpack.c.h.b16 %v229
    %v321 = vunpack.c.l.b16 %v230
    %v322 = vunpack.c.h.b16 %v230
    %v323 = vunpack.c.l.b16 %v231
    %v324 = vunpack.c.h.b16 %v231
    %v325 = vunpack.c.l.b16 %v232
    %v326 = vunpack.c.h.b16 %v232
    %v327 = vunpack.c.l.b16 %v233
    %v328 = vunpack.c.h.b16 %v233
    %v329 = vunpack.c.l.b16 %v234
    %v330 = vunpack.c.h.b16 %v234
    %v331 = vunpack.c.l.b16 %v235
    %v332 = vunpack.c.h.b16 %v235
    %v333 = vunpack.c.l.b16 %v236
    %v334 = vunpack.c.h.b16 %v236
    %v335 = vunpack.c.l.b16 %v237
    %v336 = vunpack.c.h.b16 %v237
    %v337 = vunpack.c.l.b16 %v238
    %v338 = vunpack.c.h.b16 %v238
    %v339 = vunpack.c.l.b16 %v239
    %v340 = vunpack.c.h.b16 %v239
    %v341 = vunpack.c.l.b16 %v240
    %v342 = vunpack.c.h.b16 %v240
    %v343 = vunpack.c.l.b16 %v241
    %v344 = vunpack.c.h.b16 %v241
    %v345 = vunpack.c.l.b16 %v242
    %v346 = vunpack.c.h.b16 %v242
    %v347 = vunpack.c.l.b16 %v243
    %v348 = vunpack.c.h.b16 %v243
    %v349 = vunpack.c.l.b16 %v244
    %v350 = vunpack.c.h.b16 %v244
    %v351 = vunpack.c.l.b16 %v245
    %v352 = vunpack.c.h.b16 %v245
    %v353 = vunpack.c.l.b16 %v246
    %v354 = vunpack.c.h.b16 %v246
    %v355 = vpack.c.b16 %v293, %v291
    %v356 = vpack.c.b16 %v294, %v292
    %v357 = vpack.c.b16 %v297, %v295
    %v358 = vpack.c.b16 %v298, %v296
    %v359 = vpack.c.b16 %v301, %v299
    %v360 = vpack.c.b16 %v302, %v300
    %v361 = vpack.c.b16 %v305, %v303
    %v362 = vpack.c.b16 %v306, %v304
    %v363 = vpack.c.b16 %v309, %v307
    %v364 = vpack.c.b16 %v310, %v308
    %v365 = vpack.c.b16 %v313, %v311
    %v366 = vpack.c.b16 %v314, %v312
    %v367 = vpack.c.b16 %v317, %v315
    %v368 = vpack.c.b16 %v318, %v316
    %v369 = vpack.c.b16 %v321, %v319
    %v370 = vpack.c.b16 %v322, %v320
    %v371 = vpack.c.b16 %v325, %v323
    %v372 = vpack.c.b16 %v326, %v324
    %v373 = vpack.c.b16 %v329, %v327
    %v374 = vpack.c.b16 %v330, %v328
    %v375 = vpack.c.b16 %v333, %v331
    %v376 = vpack.c.b16 %v334, %v332
    %v377 = vpack.c.b16 %v337, %v335
    %v378 = vpack.c.b16 %v338, %v336
    %v379 = vpack.c.b16 %v341, %v339
    %v380 = vpack.c.b16 %v342, %v340
    %v381 = vpack.c.b16 %v345, %v343
    %v382 = vpack.c.b16 %v346, %v344
    %v383 = vpack.c.b16 %v349, %v347
    %v384 = vpack.c.b16 %v350, %v348
    %v385 = vpack.c.b16 %v353, %v351
    %v386 = vpack.c.b16 %v354, %v352
    %419 = vmatprep.subr.bf16.mxu0 %v356
    %420 = vmatpush1.bf16.msra.mxu0 %v355
    %421 = vmatprep.subr.bf16.mxu0 %v358
    %422 = vmatpush1.bf16.msra.mxu0 %v357
    %423 = vmatprep.subr.bf16.mxu0 %v360
    %424 = vmatpush1.bf16.msra.mxu0 %v359
    %425 = vmatprep.subr.bf16.mxu0 %v362
    %426 = vmatpush1.bf16.msra.mxu0 %v361
    %427 = vmatprep.subr.bf16.mxu0 %v364
    %428 = vmatpush1.bf16.msra.mxu0 %v363
    %429 = vmatprep.subr.bf16.mxu0 %v366
    %430 = vmatpush1.bf16.msra.mxu0 %v365
    %431 = vmatprep.subr.bf16.mxu0 %v368
    %432 = vmatpush1.bf16.msra.mxu0 %v367
    %433 = vmatprep.subr.bf16.mxu0 %v370
    %434 = vmatpush1.bf16.msra.mxu0 %v369
    %435 = vmatprep.subr.bf16.mxu0 %v372
    %436 = vmatpush1.bf16.msra.mxu0 %v371
    %437 = vmatprep.subr.bf16.mxu0 %v374
    %438 = vmatpush1.bf16.msra.mxu0 %v373
    %439 = vmatprep.subr.bf16.mxu0 %v376
    %440 = vmatpush1.bf16.msra.mxu0 %v375
    %441 = vmatprep.subr.bf16.mxu0 %v378
    %442 = vmatpush1.bf16.msra.mxu0 %v377
    %443 = vmatprep.subr.bf16.mxu0 %v380
    %444 = vmatpush1.bf16.msra.mxu0 %v379
    %445 = vmatprep.subr.bf16.mxu0 %v382
    %446 = vmatpush1.bf16.msra.mxu0 %v381
    %447 = vmatprep.subr.bf16.mxu0 %v384
    %448 = vmatpush1.bf16.msra.mxu0 %v383
    %449 = vmatprep.subr.bf16.mxu0 %v386
    %450 = vmatpush1.bf16.msra.mxu0 %v385
    %451 = vmatprep.mubr.bf16.mxu0 %v214
    %452 = vmatmul.mubr.bf16.gmra.mrb[0].mxu0 %v213
    %v453 = vpop.f32.mrb[0].mxu0
    %v454 = vadd.f32 %v252, %v453
    %v455 = vpop.f32.mrb[0].mxu0
    %v456 = vadd.f32 %v256, %v455
    %v457 = vpop.f32.mrb[0].mxu0
    %v458 = vpop.f32.mrb[0].mxu0
    %459 = vdwg.mxu0
    %v460 = vmax.f32 %v454, 0.0
    %v461 = vmax.f32 %v456, 0.0
    %v462 = vpack.c.bf16 %v460, %v460
    %v463 = vpack.c.bf16 %v461, %v461
    %v464 = vld [vmem:[#allocation8] sm:$0xf]
    %v465 = vld [vmem:[#allocation8 + $0x4] sm:$0xf]
    %v466 = vld [vmem:[#allocation8 + $0x8] sm:$0xf]
    %v467 = vld [vmem:[#allocation8 + $0xc] sm:$0xf]
    %v468 = vld [vmem:[#allocation8 + $0x10] sm:$0xf]
    %v469 = vld [vmem:[#allocation8 + $0x14] sm:$0xf]
    %v470 = vld [vmem:[#allocation8 + $0x18] sm:$0xf]
    %v471 = vld [vmem:[#allocation8 + $0x1c] sm:$0xf]
    %v472 = vld [vmem:[#allocation8 + $0x20] sm:$0xf]
    %v473 = vld [vmem:[#allocation8 + $0x24] sm:$0xf]
    %v474 = vld [vmem:[#allocation8 + $0x28] sm:$0xf]
    %v475 = vld [vmem:[#allocation8 + $0x2c] sm:$0xf]
    %v476 = vld [vmem:[#allocation8 + $0x30] sm:$0xf]
    %v477 = vld [vmem:[#allocation8 + $0x34] sm:$0xf]
    %v478 = vld [vmem:[#allocation8 + $0x38] sm:$0xf]
    %v479 = vld [vmem:[#allocation8 + $0x3c] sm:$0xf]
    %v480 = vld [vmem:[#allocation8 + $0x40] sm:$0xf]
    %v481 = vld [vmem:[#allocation8 + $0x44] sm:$0xf]
    %v482 = vld [vmem:[#allocation8 + $0x48] sm:$0xf]
    %v483 = vld [vmem:[#allocation8 + $0x4c] sm:$0xf]
    %v484 = vld [vmem:[#allocation8 + $0x50] sm:$0xf]
    %v485 = vld [vmem:[#allocation8 + $0x54] sm:$0xf]
    %v486 = vld [vmem:[#allocation8 + $0x58] sm:$0xf]
    %v487 = vld [vmem:[#allocation8 + $0x5c] sm:$0xf]
    %v488 = vld [vmem:[#allocation8 + $0x60] sm:$0xf]
    %v489 = vld [vmem:[#allocation8 + $0x64] sm:$0xf]
    %v490 = vld [vmem:[#allocation8 + $0x68] sm:$0xf]
    %v491 = vld [vmem:[#allocation8 + $0x6c] sm:$0xf]
    %v492 = vld [vmem:[#allocation8 + $0x70] sm:$0xf]
    %v493 = vld [vmem:[#allocation8 + $0x74] sm:$0xf]
    %v494 = vld [vmem:[#allocation8 + $0x78] sm:$0xf]
    %v495 = vld [vmem:[#allocation8 + $0x7c] sm:$0xf]
    %s496 = sld [smem:[#allocation2]]
    %v497 = vstv %s496
    %v530 = vunpack.c.l.b16 %v464
    %v531 = vunpack.c.l.b16 %v465
    %v532 = vunpack.c.l.b16 %v466
    %v533 = vunpack.c.l.b16 %v467
    %v534 = vunpack.c.l.b16 %v468
    %v535 = vunpack.c.l.b16 %v469
    %v536 = vunpack.c.l.b16 %v470
    %v537 = vunpack.c.l.b16 %v471
    %v538 = vunpack.c.l.b16 %v472
    %v539 = vunpack.c.l.b16 %v473
    %v540 = vunpack.c.l.b16 %v474
    %v541 = vunpack.c.l.b16 %v475
    %v542 = vunpack.c.l.b16 %v476
    %v543 = vunpack.c.l.b16 %v477
    %v544 = vunpack.c.l.b16 %v478
    %v545 = vunpack.c.l.b16 %v479
    %v546 = vunpack.c.l.b16 %v480
    %v547 = vunpack.c.l.b16 %v481
    %v548 = vunpack.c.l.b16 %v482
    %v549 = vunpack.c.l.b16 %v483
    %v550 = vunpack.c.l.b16 %v484
    %v551 = vunpack.c.l.b16 %v485
    %v552 = vunpack.c.l.b16 %v486
    %v553 = vunpack.c.l.b16 %v487
    %v554 = vunpack.c.l.b16 %v488
    %v555 = vunpack.c.l.b16 %v489
    %v556 = vunpack.c.l.b16 %v490
    %v557 = vunpack.c.l.b16 %v491
    %v558 = vunpack.c.l.b16 %v492
    %v559 = vunpack.c.l.b16 %v493
    %v560 = vunpack.c.l.b16 %v494
    %v561 = vunpack.c.l.b16 %v495
    %v562 = vpack.c.b16 %v531, %v530
    %v563 = vpack.c.b16 %v533, %v532
    %v564 = vpack.c.b16 %v535, %v534
    %v565 = vpack.c.b16 %v537, %v536
    %v566 = vpack.c.b16 %v539, %v538
    %v567 = vpack.c.b16 %v541, %v540
    %v568 = vpack.c.b16 %v543, %v542
    %v569 = vpack.c.b16 %v545, %v544
    %v570 = vpack.c.b16 %v547, %v546
    %v571 = vpack.c.b16 %v549, %v548
    %v572 = vpack.c.b16 %v551, %v550
    %v573 = vpack.c.b16 %v553, %v552
    %v574 = vpack.c.b16 %v555, %v554
    %v575 = vpack.c.b16 %v557, %v556
    %v576 = vpack.c.b16 %v559, %v558
    %v577 = vpack.c.b16 %v561, %v560
    %594 = vmatprep.subr.bf16.mxu0 0
    %595 = vmatpush1.bf16.msra.mxu0 %v562
    %596 = vmatprep.subr.bf16.mxu0 0
    %597 = vmatpush1.bf16.msra.mxu0 %v563
    %598 = vmatprep.subr.bf16.mxu0 0
    %599 = vmatpush1.bf16.msra.mxu0 %v564
    %600 = vmatprep.subr.bf16.mxu0 0
    %601 = vmatpush1.bf16.msra.mxu0 %v565
    %602 = vmatprep.subr.bf16.mxu0 0
    %603 = vmatpush1.bf16.msra.mxu0 %v566
    %604 = vmatprep.subr.bf16.mxu0 0
    %605 = vmatpush1.bf16.msra.mxu0 %v567
    %606 = vmatprep.subr.bf16.mxu0 0
    %607 = vmatpush1.bf16.msra.mxu0 %v568
    %608 = vmatprep.subr.bf16.mxu0 0
    %609 = vmatpush1.bf16.msra.mxu0 %v569
    %610 = vmatprep.subr.bf16.mxu0 0
    %611 = vmatpush1.bf16.msra.mxu0 %v570
    %612 = vmatprep.subr.bf16.mxu0 0
    %613 = vmatpush1.bf16.msra.mxu0 %v571
    %614 = vmatprep.subr.bf16.mxu0 0
    %615 = vmatpush1.bf16.msra.mxu0 %v572
    %616 = vmatprep.subr.bf16.mxu0 0
    %617 = vmatpush1.bf16.msra.mxu0 %v573
    %618 = vmatprep.subr.bf16.mxu0 0
    %619 = vmatpush1.bf16.msra.mxu0 %v574
    %620 = vmatprep.subr.bf16.mxu0 0
    %621 = vmatpush1.bf16.msra.mxu0 %v575
    %622 = vmatprep.subr.bf16.mxu0 0
    %623 = vmatpush1.bf16.msra.mxu0 %v576
    %624 = vmatprep.subr.bf16.mxu0 0
    %625 = vmatpush1.bf16.msra.mxu0 %v577
    %626 = vmatprep.mubr.bf16.mxu0 %v463
    %627 = vmatmul.mubr.bf16.gmra.mrb[0].mxu0 %v462
    %v628 = vpop.f32.mrb[0].mxu0
    %v629 = vadd.f32 %v497, %v628
    %v630 = vpop.f32.mrb[0].mxu0
    %v631 = vpop.f32.mrb[0].mxu0
    %v632 = vpop.f32.mrb[0].mxu0
    %633 = vdwg.mxu0
    %634 = vst [vmem:[#allocation9] sm:$0xff] %v629
    // Predicated region
    $region50: #{tpu_custom_call.1} parent=1 // pred_check
      _
    $region51: #{tpu_custom_call.1} parent=1 // pred_check_branch
      %636 = sbr.rel (0) target = $region53
    $region52: #{tpu_custom_call.1} parent=1 // pred_region
      %s638 = ssub.s32 128, 128
      %639 = vsyncadd [#allocation5], %s638
      %s641 = sshll.u32 [#allocation9], 4
      %s642 = int_to_ptr.vmem [resolvable:$true] %s641
      %644 = dma.vmem_to_hbm [thread:$0]  %s642, 128, %s9, [#allocation5]
    $region53: #{tpu_custom_call.1} parent=1 // pred_fallthru
      _
    // Predicated region
    $region54: #{tpu_custom_call.1} parent=1 // pred_check
      _
    $region55: #{tpu_custom_call.1} parent=1 // pred_check_branch
      %646 = sbr.rel (0) target = $region57
    $region56: #{tpu_custom_call.1} parent=1 // pred_region
      %647 = dma.done [#allocation5], 128
    $region57: #{tpu_custom_call.1} parent=1 // pred_fallthru
      _
    %648 = vsyncpa [#allocation4], 1
    %649 = vsyncpa [#allocation7], 1
    %650 = vsyncpa [#allocation5], 1

</llo_original>
